<compile_context>
chip_gen: v6e
topology: v6e:2x2x1
jax: 0.10.0
libtpu: 0.0.40
codegen_flags: <defaults>
</compile_context>

<pallas_src>
import jax
import jax.numpy as jnp
from jax.experimental import pallas as pl
from jax.experimental.pallas import tpu as pltpu


def _linear_sigmoid_kernel(x_ref, w_ref, b_ref, o_ref, acc_ref):
    # x_ref  : (TB, TK)  activation block (native dtype; cast to MXU dtype here)
    # w_ref  : (N,  TK)  weight block in native (out, in) layout
    # b_ref  : (1,  N)   bias (f32)
    # o_ref  : (TB, N)   output block (written once, on the last K step)
    # acc_ref: (TB, N)   f32 accumulator scratch (resident across K steps)
    k = pl.program_id(1)

    @pl.when(k == 0)
    def _init():
        acc_ref[...] = jnp.zeros_like(acc_ref)

    x = x_ref[...].astype(w_ref.dtype)          # bf16 for the MXU; VPU cast
    acc_ref[...] += jax.lax.dot_general(
        x, w_ref[...],
        dimension_numbers=(((1,), (1,)), ((), ())),   # contract over K
        preferred_element_type=jnp.float32)

    @pl.when(k == pl.num_programs(1) - 1)
    def _finalize():
        logits = acc_ref[...] + b_ref[...]            # f32 epilogue
        o_ref[...] = jax.nn.sigmoid(logits).astype(o_ref.dtype)


def _vmem_capacity_bytes():
    try:
        info = pltpu.get_tpu_info()
        return int(getattr(info, "vmem_capacity_bytes", 64 << 20))
    except Exception:
        return 64 << 20          # conservative (v7x-sized) fallback


def _choose_tiles(B, K, x_itemsize, vmem_cap_bytes):
    """Pick (tb, tk).  tk is a lane-aligned divisor of K so the reduction
    never reads out-of-bounds K columns; tb fills a generation-aware share of
    VMEM so per-grid-step overhead is amortised (large tiles reach ~85% of
    HBM roofline vs ~30% for 128-row tiles)."""
    # K tile: multiple of 128 that divides K, capped at 8192 columns; fall
    # back to the full K extent (a full-dim block is always legal).
    if K % 128 == 0:
        tk = min(K, 8192)
        while tk > 128 and K % tk != 0:
            tk -= 128
        if K % tk != 0:
            tk = K
    else:
        tk = K

    # Batch tile: x is double-buffered; give each x buffer ~1/4 of physical
    # VMEM (32 MiB on 128 MiB parts, 16 MiB on v7x) and leave the rest for
    # weight blocks, output, accumulator and compiler scratch.
    x_buf_budget = max(2 << 20, vmem_cap_bytes // 4)
    tb_cap = (x_buf_budget // max(1, tk * x_itemsize)) // 16 * 16
    tb = int(min(1024, max(16, tb_cap)))
    if B <= tb:
        tb = B                    # full-extent block along batch (any B legal)
    return tb, tk


def linear_bert_forward(x_embed, weight, bias, *, compute_dtype=jnp.bfloat16,
                        tb=None, tk=None):
    """x_embed: (B, max_len, hidden)
       weight : (n_classes, max_len*hidden)   (PyTorch nn.Linear layout)
       bias   : (n_classes,)"""
    B = x_embed.shape[0]
    K = x_embed.shape[1] * x_embed.shape[2]
    N = weight.shape[0]
    out_dtype = x_embed.dtype

    x_flat = x_embed.reshape(B, K)                      # torch.nn.Flatten
    # One-time (init-time in a real model) weight cast; x stays in its native
    # dtype in HBM and is cast per-block inside the kernel.
    w = weight.astype(compute_dtype)
    b = bias.astype(jnp.float32).reshape(1, N)

    vmem_cap = _vmem_capacity_bytes()
    eb_x = jnp.dtype(x_flat.dtype).itemsize
    auto_tb, auto_tk = _choose_tiles(B, K, eb_x, vmem_cap)
    tb = auto_tb if tb is None else tb
    tk = auto_tk if tk is None else tk
    assert K % tk == 0, "tk must evenly divide K"
    grid = (pl.cdiv(B, tb), K // tk)

    # VMEM footprint estimate (double-buffered pipelined blocks + scratch),
    # accounting for sublane/lane padding of the narrow N dimension.
    eb_w = jnp.dtype(w.dtype).itemsize
    eb_o = jnp.dtype(out_dtype).itemsize
    n_sub = ((N + 7) // 8) * 8
    n_lane = ((N + 127) // 128) * 128
    est = (2 * tb * tk * eb_x            # x blocks (double-buffered)
           + 2 * n_sub * tk * eb_w       # weight blocks
           + 2 * 8 * n_lane * 4          # bias
           + 2 * tb * n_lane * eb_o      # output blocks
           + tb * n_lane * 4)            # f32 accumulator scratch
    cap = max(16 << 20, vmem_cap - (16 << 20))      # leave compiler headroom
    vmem_limit = int(min(max(est + (8 << 20), 16 << 20), cap))

    out = pl.pallas_call(
        _linear_sigmoid_kernel,
        out_shape=jax.ShapeDtypeStruct((B, N), out_dtype),
        grid=grid,
        in_specs=[
            pl.BlockSpec((tb, tk), lambda i, k: (i, k)),   # x: tiled over B, K
            pl.BlockSpec((N, tk), lambda i, k: (0, k)),    # weight: K-tiled
            pl.BlockSpec((1, N), lambda i, k: (0, 0)),     # bias: resident
        ],
        out_specs=pl.BlockSpec((tb, N), lambda i, k: (i, 0)),
        scratch_shapes=[pltpu.VMEM((tb, N), jnp.float32)],
        compiler_params=pltpu.CompilerParams(
            dimension_semantics=("parallel", "arbitrary"),
            vmem_limit_bytes=vmem_limit),
    )(x_flat, w, b)
    return out


def _reference(x_embed, weight, bias, compute_dtype=jnp.bfloat16):
    """Pure-JAX reference using the same bf16-matmul / f32-accumulate math."""
    xf = x_embed.reshape(x_embed.shape[0], -1).astype(compute_dtype)
    logits = jnp.dot(xf, weight.astype(compute_dtype).T,
                     preferred_element_type=jnp.float32)
    return jax.nn.sigmoid(logits + bias.astype(jnp.float32)).astype(
        x_embed.dtype)


if __name__ == "__main__":
    # Small shapes consistent with the module: hidden=32, max_len=8,
    # n_classes=2, batch=2.
    B, MAX_LEN, HIDDEN, N_CLASSES = 2, 8, 32, 2
    key = jax.random.PRNGKey(0)
    kx, kw, kb = jax.random.split(key, 3)

    x_embed = jax.random.normal(kx, (B, MAX_LEN, HIDDEN), dtype=jnp.float32)
    in_features = HIDDEN * MAX_LEN
    bound = 1.0 / (in_features ** 0.5)
    weight = jax.random.uniform(kw, (N_CLASSES, in_features),
                                minval=-bound, maxval=bound,
                                dtype=jnp.float32)
    bias = jax.random.uniform(kb, (N_CLASSES,),
                              minval=-bound, maxval=bound, dtype=jnp.float32)

    out = jax.block_until_ready(linear_bert_forward(x_embed, weight, bias))
    assert out.shape == (B, N_CLASSES)

    ref = _reference(x_embed, weight, bias)
    assert jnp.allclose(out, ref, atol=2e-3, rtol=2e-3), (
        f"max err vs bf16 ref: {jnp.max(jnp.abs(out - ref))}")
    # Loose sanity check against full-f32 math (bf16 matmul tolerance).
    ref_f32 = jax.nn.sigmoid(x_embed.reshape(B, -1) @ weight.T + bias)
    assert jnp.allclose(out, ref_f32, atol=5e-2, rtol=5e-2)

    # Exercise the ragged-batch + K-tiled accumulator path with forced tiles.
    B2, ML2, H2 = 20, 8, 128
    x2 = jax.random.normal(kx, (B2, ML2, H2), dtype=jnp.float32)
    w2 = jax.random.uniform(kw, (N_CLASSES, ML2 * H2),
                            minval=-bound, maxval=bound, dtype=jnp.float32)
    b2 = jax.random.uniform(kb, (N_CLASSES,),
                            minval=-bound, maxval=bound, dtype=jnp.float32)
    out2 = jax.block_until_ready(
        linear_bert_forward(x2, w2, b2, tb=8, tk=256))
    assert out2.shape == (B2, N_CLASSES)
    ref2 = _reference(x2, w2, b2)
    assert jnp.allclose(out2, ref2, atol=2e-3, rtol=2e-3), (
        f"max err vs bf16 ref (tiled): {jnp.max(jnp.abs(out2 - ref2))}")

    print("KERNEL_OK")
</pallas_src>

<mosaic_0001>
module attributes {stable_mosaic.version = 11 : i64} {
  func.func @_linear_sigmoid_kernel(%arg0: i32, %arg1: i32, %arg2: memref<2x256xf32, #tpu.memory_space<vmem>>, %arg3: memref<2x256xbf16, #tpu.memory_space<vmem>>, %arg4: memref<1x2xf32, #tpu.memory_space<vmem>>, %arg5: memref<2x2xf32, #tpu.memory_space<vmem>>, %arg6: memref<2x2xf32, #tpu.memory_space<vmem>>) attributes {dimension_semantics = [#tpu.dimension_semantics<parallel>, #tpu.dimension_semantics<arbitrary>], iteration_bounds = array<i64: 1, 1>, scalar_prefetch = 0 : i64, scratch_operands = 1 : i64, tpu.core_type = #tpu.core_type<tc>, window_params = [{transform_indices = @transform_0, window_bounds = array<i64: 2, 256>}, {transform_indices = @transform_1, window_bounds = array<i64: 2, 256>}, {pipeline_mode = #tpu.pipeline_mode<synchronous>, transform_indices = @transform_2, window_bounds = array<i64: 1, 2>}, {transform_indices = @transform_3, window_bounds = array<i64: 2, 2>}]} {
    %c0_i32 = arith.constant 0 : i32
    %0 = arith.cmpi eq, %arg1, %c0_i32 : i32
    %1 = arith.extui %0 : i1 to i32
    %c0_i32_0 = arith.constant 0 : i32
    %2 = arith.cmpi ne, %1, %c0_i32_0 : i32
    scf.if %2 {
      %cst_10 = arith.constant 0.000000e+00 : f32
      %13 = vector.broadcast %cst_10 : f32 to vector<2x2xf32>
      %c0_11 = arith.constant 0 : index
      %c0_12 = arith.constant 0 : index
      %14 = vector.load %arg6[%c0_11, %c0_12] : memref<2x2xf32, #tpu.memory_space<vmem>>, vector<2x2xf32>
      tpu.vector_store %arg6[%c0_11, %c0_12], %13 {strides = array<i32>} : memref<2x2xf32, #tpu.memory_space<vmem>>, vector<2x2xf32>,
    } else {
    }
    %c0 = arith.constant 0 : index
    %c0_1 = arith.constant 0 : index
    %3 = vector.load %arg2[%c0, %c0_1] : memref<2x256xf32, #tpu.memory_space<vmem>>, vector<2x256xf32>
    %4 = arith.truncf %3 : vector<2x256xf32> to vector<2x256xbf16>
    %c0_2 = arith.constant 0 : index
    %c0_3 = arith.constant 0 : index
    %5 = vector.load %arg6[%c0_2, %c0_3] : memref<2x2xf32, #tpu.memory_space<vmem>>, vector<2x2xf32>
    %c0_4 = arith.constant 0 : index
    %c0_5 = arith.constant 0 : index
    %6 = vector.load %arg3[%c0_4, %c0_5] : memref<2x256xbf16, #tpu.memory_space<vmem>>, vector<2x256xbf16>
    %cst = arith.constant dense<0.000000e+00> : vector<2x2xf32>
    %7 = tpu.matmul %4, %6, %cst {dimension_numbers = #tpu.dot_dimension_numbers<[1], [1], [0], [0], [0, 0, 1, 0], [], []>} : vector<2x256xbf16>, vector<2x256xbf16>, vector<2x2xf32> -> vector<2x2xf32>
    %8 = arith.addf %5, %7 : vector<2x2xf32>
    %c0_6 = arith.constant 0 : index
    %c0_7 = arith.constant 0 : index
    %9 = vector.load %arg6[%c0_6, %c0_7] : memref<2x2xf32, #tpu.memory_space<vmem>>, vector<2x2xf32>
    tpu.vector_store %arg6[%c0_6, %c0_7], %8 {strides = array<i32>} : memref<2x2xf32, #tpu.memory_space<vmem>>, vector<2x2xf32>,
    %c0_i32_8 = arith.constant 0 : i32
    %10 = arith.cmpi eq, %arg1, %c0_i32_8 : i32
    %11 = arith.extui %10 : i1 to i32
    %c0_i32_9 = arith.constant 0 : i32
    %12 = arith.cmpi ne, %11, %c0_i32_9 : i32
    scf.if %12 {
      %c0_10 = arith.constant 0 : index
      %c0_11 = arith.constant 0 : index
      %13 = vector.load %arg6[%c0_10, %c0_11] : memref<2x2xf32, #tpu.memory_space<vmem>>, vector<2x2xf32>
      %c0_12 = arith.constant 0 : index
      %c0_13 = arith.constant 0 : index
      %14 = vector.load %arg4[%c0_12, %c0_13] : memref<1x2xf32, #tpu.memory_space<vmem>>, vector<1x2xf32>
      %15 = vector.broadcast %14 : vector<1x2xf32> to vector<2x2xf32>
      %16 = arith.addf %13, %15 : vector<2x2xf32>
      %17 = arith.negf %16 : vector<2x2xf32>
      %18 = math.exp %17 : vector<2x2xf32>
      %cst_14 = arith.constant 1.000000e+00 : f32
      %19 = vector.broadcast %cst_14 : f32 to vector<2x2xf32>
      %20 = arith.addf %19, %18 : vector<2x2xf32>
      %21 = arith.divf %19, %20 : vector<2x2xf32>
      %c0_15 = arith.constant 0 : index
      %c0_16 = arith.constant 0 : index
      %22 = vector.load %arg5[%c0_15, %c0_16] : memref<2x2xf32, #tpu.memory_space<vmem>>, vector<2x2xf32>
      tpu.vector_store %arg5[%c0_15, %c0_16], %21 {strides = array<i32>} : memref<2x2xf32, #tpu.memory_space<vmem>>, vector<2x2xf32>,
    } else {
    }
    return
  }
  func.func @transform_0(%arg0: i32, %arg1: i32) -> (i32, i32) {
    %c0_i32 = arith.constant 0 : i32
    return %arg0, %arg1 : i32, i32
  }
  func.func @transform_1(%arg0: i32, %arg1: i32) -> (i32, i32) {
    %c0_i32 = arith.constant 0 : i32
    %c0_i32_0 = arith.constant 0 : i32
    return %c0_i32, %arg1 : i32, i32
  }
  func.func @transform_2(%arg0: i32, %arg1: i32) -> (i32, i32) {
    %c0_i32 = arith.constant 0 : i32
    %c0_i32_0 = arith.constant 0 : i32
    %c0_i32_1 = arith.constant 0 : i32
    return %c0_i32, %c0_i32_0 : i32, i32
  }
  func.func @transform_3(%arg0: i32, %arg1: i32) -> (i32, i32) {
    %c0_i32 = arith.constant 0 : i32
    %c0_i32_0 = arith.constant 0 : i32
    return %arg0, %c0_i32 : i32, i32
  }
}

</mosaic_0001>

<llo_original>
// kernel: tpu_custom_call.1
$region0: #{tpu_custom_call.1}
  #allocation0 [shape = 'u32[]', space=smem, size = 0x4, offset = 0x4, fixed_abs, tag = 'smem constant byte address 0x4 - core index']
  #allocation1 [shape = 'u32[144,128]{1,0:T(1,128)}', space=vmem, size = 0x12000, scoped, tag = 'internal scratch']
  #allocation2 [shape = 'f32[2,2]{1,0:T(2,128)}', space=vmem, size = 0x400, scoped, tag = 'scratch operand']
  %s0 = inlined_call_operand.hbm [shape: f32[2,256], index: 0, kind: input, shape index: {}]
  %s1 = inlined_call_operand.hbm [shape: bf16[2,256], index: 1, kind: input, shape index: {}]
  %s2 = inlined_call_operand.vmem [shape: f32[1,2], index: 2, kind: input, shape index: {}]
  %s3 = inlined_call_operand.hbm [shape: f32[2,2], index: 3, kind: output, shape index: {}]
  %s4 = sld [smem:[#allocation0]]
  $region38: #{tpu_custom_call.1} parent=0
    _
  %s6 = ssub.s32 1, %s4
  %s7 = scalar_select 0, %s6, %s4
  $region1: #{tpu_custom_call.1} parent=0
    #allocation3 [shape = 'u8[2048]{0}', space=vmem, size = 0x800, scoped, tag = 'input window, operand 0, single buffered']
    #allocation4 [shape = 's32[1]{0}', space=sflag, size = 0x4, scoped, tag = 'scoped memory for tpu_custom_call.1']
    #allocation5 [shape = 's32[1]{0}', space=sflag, size = 0x4, scoped, tag = 'scoped memory for tpu_custom_call.1']
    #allocation6 [shape = 'u8[1024]{0}', space=vmem, size = 0x400, scoped, tag = 'input window, operand 1, single buffered']
    #allocation7 [shape = 's32[1]{0}', space=sflag, size = 0x4, scoped, tag = 'scoped memory for tpu_custom_call.1']
    #allocation8 [shape = 'u8[1024]{0}', space=vmem, size = 0x400, scoped, tag = 'output window, operand 0, single buffered']
    %8 = vsyncpa [#allocation4], 0
    %9 = vsyncpa [#allocation7], 0
    %10 = vsyncpa [#allocation5], 0
    // Predicated region
    $region2: #{tpu_custom_call.1} parent=1 // pred_check
      _
    $region3: #{tpu_custom_call.1} parent=1 // pred_check_branch
      %12 = sbr.rel (0) target = $region5
    $region4: #{tpu_custom_call.1} parent=1 // pred_region
      %s14 = ssub.s32 64, 64
      %15 = vsyncadd [#allocation4], %s14
      %s17 = sshll.u32 [#allocation3], 4
      %s18 = int_to_ptr.vmem [resolvable:$true] %s17
      %20 = dma.hbm_to_vmem [thread:$0]  %s0, 64, %s18, [#allocation4]
    $region5: #{tpu_custom_call.1} parent=1 // pred_fallthru
      _
    // Predicated region
    $region6: #{tpu_custom_call.1} parent=1 // pred_check
      _
    $region7: #{tpu_custom_call.1} parent=1 // pred_check_branch
      %22 = sbr.rel (0) target = $region9
    $region8: #{tpu_custom_call.1} parent=1 // pred_region
      %s24 = ssub.s32 32, 32
      %25 = vsyncadd [#allocation7], %s24
      %s27 = sshll.u32 [#allocation6], 4
      %s28 = int_to_ptr.vmem [resolvable:$true] %s27
      %30 = dma.hbm_to_vmem [thread:$0]  %s1, 32, %s28, [#allocation7]
    $region9: #{tpu_custom_call.1} parent=1 // pred_fallthru
      _
    // Predicated region
    $region10: #{tpu_custom_call.1} parent=1 // pred_check
      _
    $region11: #{tpu_custom_call.1} parent=1 // pred_check_branch
      %32 = sbr.rel (0) target = $region13
    $region12: #{tpu_custom_call.1} parent=1 // pred_region
      _
    $region13: #{tpu_custom_call.1} parent=1 // pred_fallthru
      _
    // Predicated region
    $region14: #{tpu_custom_call.1} parent=1 // pred_check
      _
    $region15: #{tpu_custom_call.1} parent=1 // pred_check_branch
      %34 = sbr.rel (0) target = $region17
    $region16: #{tpu_custom_call.1} parent=1 // pred_region
      %35 = dma.done [#allocation4], 64
    $region17: #{tpu_custom_call.1} parent=1 // pred_fallthru
      _
    // Predicated region
    $region18: #{tpu_custom_call.1} parent=1 // pred_check
      _
    $region19: #{tpu_custom_call.1} parent=1 // pred_check_branch
      %37 = sbr.rel (0) target = $region21
    $region20: #{tpu_custom_call.1} parent=1 // pred_region
      %38 = dma.done [#allocation7], 32
    $region21: #{tpu_custom_call.1} parent=1 // pred_fallthru
      _
    %p40 = scmp.eq.s32.totalorder 0, 0
    // Predicated region
    $region22: #{tpu_custom_call.1} parent=1 // pred_check
      %p41 = pneg %p40
    $region23: #{tpu_custom_call.1} parent=1 // pred_check_branch
      %43 = sbr.rel (%p41) target = $region25
    $region24: #{tpu_custom_call.1} parent=1 // pred_region
      %vm44 = vcmask 9216
      %45 = vst.msk [vmem:[#allocation2] sm:$0x3] %vm44, 0.0
    $region25: #{tpu_custom_call.1} parent=1 // pred_fallthru
      _
    %v46 = vld [vmem:[#allocation3] sm:$0xf]
    %v49 = vunpack.c.l.s4 1983009808
    %v50 = vunpack.c.0.s8 %v49
    %v51 = vlaneseq
    %v52 = vshrl.u32 %v51, 7
    %v53 = vsub.s32 %v50, %v52
    %v54 = vrot.slane %v46, %v53
    %v55 = vcombine.high %v54, %v54
    %v58 = vpack.c.bf16 %v54, %v54
    %v59 = vpack.c.bf16 %v55, %v55
    %v60 = vld [vmem:[#allocation2] sm:$0x3]
    %v61 = vld [vmem:[#allocation6] sm:$0x3]
    %v64 = vunpack.c.l.s4 1966171168
    %v65 = vunpack.c.0.s8 %v64
    %v66 = vlaneseq
    %v67 = vshrl.u32 %v66, 7
    %v68 = vsub.s32 %v65, %v67
    %v69 = vrot.slane %v61, %v68
    %v70 = vcombine.high %v69, %v69
    %v72 = vunpack.c.l.s4 1966171168
    %v73 = vunpack.c.0.s8 %v72
    %v74 = vlaneseq
    %v75 = vshrl.u32 %v74, 7
    %v76 = vsub.s32 %v73, %v75
    %v77 = vrot.slane %v69, %v76
    %v79 = vunpack.c.l.s4 1966171168
    %v80 = vunpack.c.0.s8 %v79
    %v81 = vlaneseq
    %v82 = vshrl.u32 %v81, 7
    %v83 = vsub.s32 %v80, %v82
    %v84 = vrot.slane %v70, %v83
    %87 = vmatprep.subr.bf16.mxu0 0
    %88 = vmatpush1.bf16.xpose.msra.mxu0 0
    %89 = vmatprep.subr.bf16.mxu0 0
    %90 = vmatpush1.bf16.xpose.msra.mxu0 0
    %91 = vmatprep.subr.bf16.mxu0 0
    %92 = vmatpush1.bf16.xpose.msra.mxu0 0
    %93 = vmatprep.subr.bf16.mxu0 0
    %94 = vmatpush1.bf16.xpose.msra.mxu0 0
    %95 = vmatprep.subr.bf16.mxu0 0
    %96 = vmatpush1.bf16.xpose.msra.mxu0 0
    %97 = vmatprep.subr.bf16.mxu0 0
    %98 = vmatpush1.bf16.xpose.msra.mxu0 0
    %99 = vmatprep.subr.bf16.mxu0 0
    %100 = vmatpush1.bf16.xpose.msra.mxu0 0
    %101 = vmatprep.subr.bf16.mxu0 %v84
    %102 = vmatpush1.bf16.xpose.msra.mxu0 %v77
    %103 = vmatprep.subr.bf16.mxu0 0
    %104 = vmatpush2.bf16.xpose.msra.mxu0 0
    %105 = vmatprep.subr.bf16.mxu0 0
    %106 = vmatpush2.bf16.xpose.msra.mxu0 0
    %107 = vmatprep.subr.bf16.mxu0 0
    %108 = vmatpush2.bf16.xpose.msra.mxu0 0
    %109 = vmatprep.subr.bf16.mxu0 0
    %110 = vmatpush2.bf16.xpose.msra.mxu0 0
    %111 = vmatprep.subr.bf16.mxu0 0
    %112 = vmatpush2.bf16.xpose.msra.mxu0 0
    %113 = vmatprep.subr.bf16.mxu0 0
    %114 = vmatpush2.bf16.xpose.msra.mxu0 0
    %115 = vmatprep.subr.bf16.mxu0 0
    %116 = vmatpush2.bf16.xpose.msra.mxu0 0
    %117 = vmatprep.subr.bf16.mxu0 0
    %118 = vmatpush2.bf16.xpose.msra.mxu0 0
    %119 = vmatprep.mubr.bf16.mxu0 %v59
    %120 = vmatmul.mubr.bf16.gmra.mxu0 %v58
    %v121 = vpop.f32.mrf.mxu0
    %v122 = vadd.f32 0.0, %v121
    %v123 = vpop.f32.mrf.mxu0
    %v124 = vpop.f32.mrf.mxu0
    %v125 = vpop.f32.mrf.mxu0
    %126 = vdwg.mxu0
    %v127 = vadd.f32 %v60, %v122
    %vm128 = vcmask 9216
    %129 = vst.msk [vmem:[#allocation2] sm:$0x3] %vm128, %v127
    // Predicated region
    $region26: #{tpu_custom_call.1} parent=1 // pred_check
      %p130 = pneg %p40
    $region27: #{tpu_custom_call.1} parent=1 // pred_check_branch
      %132 = sbr.rel (%p130) target = $region29
    $region28: #{tpu_custom_call.1} parent=1 // pred_region
      %v133 = vld [vmem:[#allocation2] sm:$0x3]
      %v134 = vld [vmem:[%s2] sm:$0x1]
      %v136 = vlaneseq
      %v137 = vshrl.u32 %v136, 7
      %v138 = vsub.s32 0, %v137
      %v139 = vrot.slane %v134, %v138
      %v141 = vadd.f32 %v133, %v139
      %v142 = vxor.u32 %v141, 2147483648
      %v143 = vmul.f32 %v142, 1.442695
      %v144 = vpow.pop %v143
      %v145 = vadd.f32 %v144, 1.0
      %v146 = vrcp.pop %v145
      %v147 = vmul.f32 1.0, %v146
      %148 = vst.msk [vmem:[#allocation8] sm:$0x3] %vm128, %v147
    $region29: #{tpu_custom_call.1} parent=1 // pred_fallthru
      _
    // Predicated region
    $region30: #{tpu_custom_call.1} parent=1 // pred_check
      _
    $region31: #{tpu_custom_call.1} parent=1 // pred_check_branch
      %150 = sbr.rel (0) target = $region33
    $region32: #{tpu_custom_call.1} parent=1 // pred_region
      %s152 = ssub.s32 32, 32
      %153 = vsyncadd [#allocation5], %s152
      %s155 = sshll.u32 [#allocation8], 4
      %s156 = int_to_ptr.vmem [resolvable:$true] %s155
      %158 = dma.vmem_to_hbm [thread:$0]  %s156, 32, %s3, [#allocation5]
    $region33: #{tpu_custom_call.1} parent=1 // pred_fallthru
      _
    // Predicated region
    $region34: #{tpu_custom_call.1} parent=1 // pred_check
      _
    $region35: #{tpu_custom_call.1} parent=1 // pred_check_branch
      %160 = sbr.rel (0) target = $region37
    $region36: #{tpu_custom_call.1} parent=1 // pred_region
      %161 = dma.done [#allocation5], 32
    $region37: #{tpu_custom_call.1} parent=1 // pred_fallthru
      _
    %162 = vsyncpa [#allocation4], 1
    %163 = vsyncpa [#allocation7], 1
    %164 = vsyncpa [#allocation5], 1

</llo_original>
